<compile_context>
chip_gen: v7x
topology: tpu7x:2x2x1
jax: 0.10.0
libtpu: 0.0.40
codegen_flags: <defaults>
</compile_context>

<pallas_src>
import numpy as np
import jax
import jax.numpy as jnp
from jax import lax
from jax.experimental import pallas as pl
from jax.experimental.pallas import tpu as pltpu


def _round_up(x, m):
    return ((x + m - 1) // m) * m


# ======================================================================================
# Kernel: one grid step = one block of BB batch rows -> two partial scalar sums
# ======================================================================================
def _get_loss_block_kernel(pred_ref, target_ref, trans_ref, out_ref):
    """pred_ref:   (BB, NC)    log-probabilities (any float dtype)
       target_ref: (BB, 1)     int32 class indices
       trans_ref:  (BB, K, K)  feature transforms (any float dtype)
       out_ref:    (1, 8, 128) f32; [0,0,0] = sum_b -logp[b, t_b]
                                    [0,0,1] = sum_b ||T_b T_b^T - I||_F
    """
    # ---- NLL partial: -sum_b pred[b, target[b]] via a vectorized one-hot pick -------
    logp = pred_ref[...].astype(jnp.float32)                       # (BB, NC)
    tgt = target_ref[...]                                          # (BB, 1) i32
    cls = lax.broadcasted_iota(jnp.int32, logp.shape, 1)           # class ids on lanes
    neg_logp_sum = -jnp.sum(jnp.where(cls == tgt, logp, 0.0))

    # ---- Regularizer partial: sum_b ||T_b T_b^T - I||_F (batched MXU gram) ----------
    T = trans_ref[...]                                             # (BB, K, K)
    k = T.shape[-1]
    gram = lax.dot_general(T, T, (((2,), (2,)), ((0,), (0,))),     # batched T @ T^T
                           preferred_element_type=jnp.float32)     # (BB, K, K) f32
    ri = lax.broadcasted_iota(jnp.int32, (k, k), 0)
    ci = lax.broadcasted_iota(jnp.int32, (k, k), 1)
    eye = jnp.where(ri == ci, 1.0, 0.0).astype(jnp.float32)        # built once / block
    diff = gram - eye[None]
    sq = diff * diff
    per_b = jnp.sum(jnp.sum(sq, axis=2), axis=1, keepdims=True)    # (BB, 1)
    fro_sum = jnp.sum(jnp.sqrt(per_b))

    # ---- write this block's partial sums into a full lane-dense (8,128) tile --------
    sub = lax.broadcasted_iota(jnp.int32, (8, 128), 0)
    lane = lax.broadcasted_iota(jnp.int32, (8, 128), 1)
    tile = jnp.where((sub == 0) & (lane == 0), neg_logp_sum,
                     jnp.where((sub == 0) & (lane == 1), fro_sum, 0.0))
    out_ref[...] = tile.reshape(1, 8, 128)


# ======================================================================================
# Wrapper: get_loss.forward(pred, target, trans_feat)
# ======================================================================================
def get_loss_forward(pred, target, trans_feat, mat_diff_loss_scale=0.001, block_b=None):
    B, NC = pred.shape
    Bt, K, K2 = trans_feat.shape
    assert Bt == B and K == K2, "trans_feat must be (B, K, K)"

    # ---- choose a batch block size: whole batch if it fits, capped for v7x VMEM -----
    itemsize = jnp.dtype(trans_feat.dtype).itemsize
    if block_b is None:
        vmem_cap = max(8, ((8 << 20) // (K * K * itemsize)) // 8 * 8)  # <= ~8 MiB/buf
        block_b = min(_round_up(B, 8), vmem_cap)
    block_b = max(8, (block_b // 8) * 8)           # sublane-aligned block
    B_pad = _round_up(B, block_b)
    num_blocks = B_pad // block_b

    # ---- pad so padded rows contribute exactly zero to both partial sums ------------
    #   pred rows = 0 with target = 0  -> picked logp = 0
    #   trans rows = I                 -> gram = I, diff = 0, fro = 0
    target_2d = target.astype(jnp.int32).reshape(B, 1)
    if B_pad != B:
        padn = B_pad - B
        pred = jnp.concatenate([pred, jnp.zeros((padn, NC), pred.dtype)], axis=0)
        target_2d = jnp.concatenate(
            [target_2d, jnp.zeros((padn, 1), jnp.int32)], axis=0)
        eye_pad = jnp.broadcast_to(jnp.eye(K, dtype=trans_feat.dtype), (padn, K, K))
        trans_feat = jnp.concatenate([trans_feat, eye_pad], axis=0)

    partials = pl.pallas_call(
        _get_loss_block_kernel,
        out_shape=jax.ShapeDtypeStruct((num_blocks, 8, 128), jnp.float32),
        grid_spec=pltpu.PrefetchScalarGridSpec(
            num_scalar_prefetch=0,
            grid=(num_blocks,),
            in_specs=[pl.BlockSpec((block_b, NC), lambda i: (i, 0)),
                      pl.BlockSpec((block_b, 1), lambda i: (i, 0)),
                      pl.BlockSpec((block_b, K, K), lambda i: (i, 0, 0))],
            out_specs=pl.BlockSpec((1, 8, 128), lambda i: (i, 0, 0))),
        compiler_params=pltpu.CompilerParams(
            # each block writes an independent output row -> shard across TCs on v7x
            dimension_semantics=("parallel",)),
    )(pred, target_2d, trans_feat)

    neg_logp_sum = jnp.sum(partials[:, 0, 0])
    fro_sum = jnp.sum(partials[:, 0, 1])
    inv_b = jnp.float32(1.0 / B)
    return neg_logp_sum * inv_b + jnp.float32(mat_diff_loss_scale) * (fro_sum * inv_b)


# ======================================================================================
# Pure-JAX reference (mirrors the torch code) for a correctness check
# ======================================================================================
def _reference_get_loss(pred, target, trans_feat, mat_diff_loss_scale=0.001):
    B = pred.shape[0]
    nll = -jnp.mean(pred[jnp.arange(B), target])
    K = trans_feat.shape[1]
    eye = jnp.eye(K, dtype=jnp.float32)
    gram = jnp.einsum('bij,bkj->bik', trans_feat.astype(jnp.float32),
                      trans_feat.astype(jnp.float32))
    fro = jnp.sqrt(jnp.sum((gram - eye[None]) ** 2, axis=(1, 2)))
    return nll + mat_diff_loss_scale * jnp.mean(fro)


if __name__ == "__main__":
    key = jax.random.PRNGKey(0)
    B, NC, K = 4, 16, 32                   # small shapes: batch=4, classes=16, hidden=32
    scale = 0.001

    k1, k2, k3 = jax.random.split(key, 3)
    logits = jax.random.normal(k1, (B, NC), dtype=jnp.float32)
    pred = jax.nn.log_softmax(logits, axis=-1)                   # log-probabilities
    target = jax.random.randint(k2, (B,), 0, NC, dtype=jnp.int32)
    trans_feat = jax.random.normal(k3, (B, K, K), dtype=jnp.float32) * 0.1

    total = get_loss_forward(pred, target, trans_feat, mat_diff_loss_scale=scale)
    total = jax.block_until_ready(total)

    ref = _reference_get_loss(pred, target, trans_feat, mat_diff_loss_scale=scale)
    np.testing.assert_allclose(np.asarray(total), np.asarray(ref),
                               rtol=1e-4, atol=1e-4)
    print("KERNEL_OK")
</pallas_src>

<mosaic_0001>
module attributes {stable_mosaic.version = 11 : i64} {
  func.func @_get_loss_block_kernel(%arg0: i32, %arg1: memref<8x16xf32, #tpu.memory_space<vmem>>, %arg2: memref<8x1xi32, #tpu.memory_space<vmem>>, %arg3: memref<8x32x32xf32, #tpu.memory_space<vmem>>, %arg4: memref<1x8x128xf32, #tpu.memory_space<vmem>>) attributes {dimension_semantics = [#tpu.dimension_semantics<parallel>], iteration_bounds = array<i64: 1>, scalar_prefetch = 0 : i64, scratch_operands = 0 : i64, tpu.core_type = #tpu.core_type<tc>, window_params = [{transform_indices = @transform_0, window_bounds = array<i64: 8, 16>}, {transform_indices = @transform_1, window_bounds = array<i64: 8, 1>}, {transform_indices = @transform_2, window_bounds = array<i64: 8, 32, 32>}, {transform_indices = @transform_3, window_bounds = array<i64: 1, 8, 128>}]} {
    %c0 = arith.constant 0 : index
    %c0_0 = arith.constant 0 : index
    %0 = vector.load %arg1[%c0, %c0_0] : memref<8x16xf32, #tpu.memory_space<vmem>>, vector<8x16xf32>
    %c0_1 = arith.constant 0 : index
    %c0_2 = arith.constant 0 : index
    %1 = vector.load %arg2[%c0_1, %c0_2] : memref<8x1xi32, #tpu.memory_space<vmem>>, vector<8x1xi32>
    %2 = tpu.iota {dimensions = array<i32: 1>} : vector<8x16xi32>
    %3 = vector.broadcast %1 : vector<8x1xi32> to vector<8x16xi32>
    %4 = arith.cmpi eq, %2, %3 : vector<8x16xi32>
    %cst = arith.constant 0.000000e+00 : f32
    %5 = vector.broadcast %cst : f32 to vector<8x16xf32>
    %6 = arith.select %4, %0, %5 : vector<8x16xi1>, vector<8x16xf32>
    %7 = vector.shape_cast %6 : vector<8x16xf32> to vector<1x8x16xf32>
    %cst_3 = arith.constant dense<0.000000e+00> : vector<1xf32>
    %8 = vector.multi_reduction <add>, %7, %cst_3 [1, 2] : vector<1x8x16xf32> to vector<1xf32>
    %9 = vector.shape_cast %8 : vector<1xf32> to vector<1x1x1xf32>
    %10 = vector.extract %9[0, 0, 0] : f32 from vector<1x1x1xf32>
    %cst_4 = arith.constant 0.000000e+00 : f32
    %11 = arith.subf %cst_4, %10 : f32
    %c0_5 = arith.constant 0 : index
    %c0_6 = arith.constant 0 : index
    %c0_7 = arith.constant 0 : index
    %12 = vector.load %arg3[%c0_5, %c0_6, %c0_7] : memref<8x32x32xf32, #tpu.memory_space<vmem>>, vector<8x32x32xf32>
    %cst_8 = arith.constant dense<0.000000e+00> : vector<8x32x32xf32>
    %13 = tpu.matmul %12, %12, %cst_8 {dimension_numbers = #tpu.dot_dimension_numbers<[2], [2], [1], [1], [0, 0, 0, 1, 1, 1], [0], [0]>} : vector<8x32x32xf32>, vector<8x32x32xf32>, vector<8x32x32xf32> -> vector<8x32x32xf32>
    %14 = tpu.iota {dimensions = array<i32: 0>} : vector<32x32xi32>
    %15 = tpu.iota {dimensions = array<i32: 1>} : vector<32x32xi32>
    %16 = arith.cmpi eq, %14, %15 : vector<32x32xi32>
    %cst_9 = arith.constant 1.000000e+00 : f32
    %cst_10 = arith.constant 0.000000e+00 : f32
    %17 = vector.broadcast %cst_9 : f32 to vector<32x32xf32>
    %18 = vector.broadcast %cst_10 : f32 to vector<32x32xf32>
    %19 = arith.select %16, %17, %18 : vector<32x32xi1>, vector<32x32xf32>
    %20 = vector.shape_cast %19 : vector<32x32xf32> to vector<1x32x32xf32>
    %21 = vector.broadcast %20 : vector<1x32x32xf32> to vector<8x32x32xf32>
    %22 = arith.subf %13, %21 : vector<8x32x32xf32>
    %23 = arith.mulf %22, %22 : vector<8x32x32xf32>
    %cst_11 = arith.constant dense<0.000000e+00> : vector<8x32xf32>
    %24 = vector.multi_reduction <add>, %23, %cst_11 [2] : vector<8x32x32xf32> to vector<8x32xf32>
    %cst_12 = arith.constant dense<0.000000e+00> : vector<8xf32>
    %25 = vector.multi_reduction <add>, %24, %cst_12 [1] : vector<8x32xf32> to vector<8xf32>
    %26 = vector.shape_cast %25 : vector<8xf32> to vector<8x1xf32>
    %27 = math.sqrt %26 : vector<8x1xf32>
    %28 = vector.shape_cast %27 : vector<8x1xf32> to vector<1x8x1xf32>
    %cst_13 = arith.constant dense<0.000000e+00> : vector<1xf32>
    %29 = vector.multi_reduction <add>, %28, %cst_13 [1, 2] : vector<1x8x1xf32> to vector<1xf32>
    %30 = vector.shape_cast %29 : vector<1xf32> to vector<1x1x1xf32>
    %31 = vector.extract %30[0, 0, 0] : f32 from vector<1x1x1xf32>
    %32 = tpu.iota {dimensions = array<i32: 0>} : vector<8x128xi32>
    %33 = tpu.iota {dimensions = array<i32: 1>} : vector<8x128xi32>
    %c0_i32 = arith.constant 0 : i32
    %34 = vector.broadcast %c0_i32 : i32 to vector<8x128xi32>
    %35 = arith.cmpi eq, %32, %34 : vector<8x128xi32>
    %c0_i32_14 = arith.constant 0 : i32
    %36 = vector.broadcast %c0_i32_14 : i32 to vector<8x128xi32>
    %37 = arith.cmpi eq, %33, %36 : vector<8x128xi32>
    %38 = arith.andi %35, %37 : vector<8x128xi1>
    %c0_i32_15 = arith.constant 0 : i32
    %39 = vector.broadcast %c0_i32_15 : i32 to vector<8x128xi32>
    %40 = arith.cmpi eq, %32, %39 : vector<8x128xi32>
    %c1_i32 = arith.constant 1 : i32
    %41 = vector.broadcast %c1_i32 : i32 to vector<8x128xi32>
    %42 = arith.cmpi eq, %33, %41 : vector<8x128xi32>
    %43 = arith.andi %40, %42 : vector<8x128xi1>
    %cst_16 = arith.constant 0.000000e+00 : f32
    %44 = vector.broadcast %31 : f32 to vector<8x128xf32>
    %45 = vector.broadcast %cst_16 : f32 to vector<8x128xf32>
    %46 = arith.select %43, %44, %45 : vector<8x128xi1>, vector<8x128xf32>
    %47 = vector.broadcast %11 : f32 to vector<8x128xf32>
    %48 = arith.select %38, %47, %46 : vector<8x128xi1>, vector<8x128xf32>
    %49 = vector.shape_cast %48 : vector<8x128xf32> to vector<1x8x128xf32>
    %c0_17 = arith.constant 0 : index
    %c0_18 = arith.constant 0 : index
    %c0_19 = arith.constant 0 : index
    %50 = vector.load %arg4[%c0_17, %c0_18, %c0_19] : memref<1x8x128xf32, #tpu.memory_space<vmem>>, vector<1x8x128xf32>
    tpu.vector_store %arg4[%c0_17, %c0_18, %c0_19], %49 {strides = array<i32>} : memref<1x8x128xf32, #tpu.memory_space<vmem>>, vector<1x8x128xf32>,
    return
  }
  func.func @transform_0(%arg0: i32) -> (i32, i32) {
    %c0_i32 = arith.constant 0 : i32
    %c0_i32_0 = arith.constant 0 : i32
    return %arg0, %c0_i32 : i32, i32
  }
  func.func @transform_1(%arg0: i32) -> (i32, i32) {
    %c0_i32 = arith.constant 0 : i32
    %c0_i32_0 = arith.constant 0 : i32
    return %arg0, %c0_i32 : i32, i32
  }
  func.func @transform_2(%arg0: i32) -> (i32, i32, i32) {
    %c0_i32 = arith.constant 0 : i32
    %c0_i32_0 = arith.constant 0 : i32
    %c0_i32_1 = arith.constant 0 : i32
    return %arg0, %c0_i32, %c0_i32_0 : i32, i32, i32
  }
  func.func @transform_3(%arg0: i32) -> (i32, i32, i32) {
    %c0_i32 = arith.constant 0 : i32
    %c0_i32_0 = arith.constant 0 : i32
    %c0_i32_1 = arith.constant 0 : i32
    return %arg0, %c0_i32, %c0_i32_0 : i32, i32, i32
  }
}

</mosaic_0001>

<llo_original>
// kernel: tpu_custom_call.1
$region0: #{tpu_custom_call.1}
  #allocation0 [shape = 'u32[]', space=smem, size = 0x4, offset = 0x4, fixed_abs, tag = 'smem constant byte address 0x4 - core index']
  #allocation1 [shape = 'u32[144,128]{1,0:T(1,128)}', space=vmem, size = 0x12000, scoped, tag = 'internal scratch']
  %s0 = inlined_call_operand.vmem [shape: f32[8,16], index: 0, kind: input, shape index: {}]
  %s1 = inlined_call_operand.vmem [shape: s32[8,1], index: 1, kind: input, shape index: {}]
  %s2 = inlined_call_operand.hbm [shape: f32[8,32,32], index: 2, kind: input, shape index: {}]
  %s3 = inlined_call_operand.hbm [shape: f32[1,8,128], index: 3, kind: output, shape index: {}]
  %s4 = sld [smem:[#allocation0]]
  $region26: #{tpu_custom_call.1} parent=0
    _
  %s6 = ssub.s32 1, %s4
  %s7 = scalar_select 0, %s6, %s4
  $region1: #{tpu_custom_call.1} parent=0
    #allocation2 [shape = 'u8[131072]{0}', space=vmem, size = 0x20000, scoped, tag = 'input window, operand 2, single buffered']
    #allocation3 [shape = 's32[1]{0}', space=sflag, size = 0x4, scoped, tag = 'scoped memory for tpu_custom_call.1']
    #allocation4 [shape = 's32[1]{0}', space=sflag, size = 0x4, scoped, tag = 'scoped memory for tpu_custom_call.1']
    #allocation5 [shape = 'u8[4096]{0}', space=vmem, size = 0x1000, scoped, tag = 'output window, operand 0, single buffered']
    %8 = vsyncpa [#allocation3], 0
    %9 = vsyncpa [#allocation4], 0
    // Predicated region
    $region2: #{tpu_custom_call.1} parent=1 // pred_check
      _
    $region3: #{tpu_custom_call.1} parent=1 // pred_check_branch
      %11 = sbr.rel (0) target = $region5
    $region4: #{tpu_custom_call.1} parent=1 // pred_region
      _
    $region5: #{tpu_custom_call.1} parent=1 // pred_fallthru
      _
    // Predicated region
    $region6: #{tpu_custom_call.1} parent=1 // pred_check
      _
    $region7: #{tpu_custom_call.1} parent=1 // pred_check_branch
      %13 = sbr.rel (0) target = $region9
    $region8: #{tpu_custom_call.1} parent=1 // pred_region
      _
    $region9: #{tpu_custom_call.1} parent=1 // pred_fallthru
      _
    // Predicated region
    $region10: #{tpu_custom_call.1} parent=1 // pred_check
      _
    $region11: #{tpu_custom_call.1} parent=1 // pred_check_branch
      %15 = sbr.rel (0) target = $region13
    $region12: #{tpu_custom_call.1} parent=1 // pred_region
      %s17 = ssub.s32 4096, 4096
      %18 = vsyncadd [#allocation3], %s17
      %s19 = sshll.u32 [#allocation2], 4
      %s20 = int_to_ptr.vmem [resolvable:$true] %s19
      %25 = dma.hbm_to_vmem [thread:$0]  %s2, 4096, %s20, [#allocation3], 128, 128, 8
    $region13: #{tpu_custom_call.1} parent=1 // pred_fallthru
      _
    // Predicated region
    $region14: #{tpu_custom_call.1} parent=1 // pred_check
      _
    $region15: #{tpu_custom_call.1} parent=1 // pred_check_branch
      %27 = sbr.rel (0) target = $region17
    $region16: #{tpu_custom_call.1} parent=1 // pred_region
      %28 = dma.done [#allocation3], 4096
    $region17: #{tpu_custom_call.1} parent=1 // pred_fallthru
      _
    %v29 = vld [vmem:[%s0] sm:$0xff]
    %v30 = vld [vmem:[%s1] sm:$0xff]
    %v31 = vlaneseq
    %v32 = vand.u32 %v31, 127
    %33 = vset.pattern.permute.xlu0 0
    %34 = vperm.xlu0 %33, %v30
    %v35 = vpop.permute.xlu0 %34
    %vm36 = vcmp.eq.s32.totalorder %v32, %v35
    %v37 = vsel %vm36, %v29, 0.0
    %vm38 = vcmask 130048
    %v39 = vsel %vm38, %v37, 0.0
    %40 = vadd.xlane.f32.xlu0 %v39
    %v41 = vpop.xlane.xlu0 %40
    %v42 = vrot.slane %v41, 4
    %v43 = vadd.f32 %v41, %v42
    %v44 = vrot.slane %v43, 2
    %v45 = vadd.f32 %v43, %v44
    %v46 = vrot.slane %v45, 1
    %v47 = vadd.f32 %v45, %v46
    %s48 = vtos %v47
    %s49 = ssub.f32 0.0, %s48
    %v50 = vld [vmem:[#allocation2] sm:$0xff]
    %v51 = vld [vmem:[#allocation2 + $0x8] sm:$0xff]
    %v52 = vld [vmem:[#allocation2 + $0x10] sm:$0xff]
    %v53 = vld [vmem:[#allocation2 + $0x18] sm:$0xff]
    %v54 = vld [vmem:[#allocation2 + $0x20] sm:$0xff]
    %v55 = vld [vmem:[#allocation2 + $0x28] sm:$0xff]
    %v56 = vld [vmem:[#allocation2 + $0x30] sm:$0xff]
    %v57 = vld [vmem:[#allocation2 + $0x38] sm:$0xff]
    %v58 = vld [vmem:[#allocation2 + $0x40] sm:$0xff]
    %v59 = vld [vmem:[#allocation2 + $0x48] sm:$0xff]
    %v60 = vld [vmem:[#allocation2 + $0x50] sm:$0xff]
    %v61 = vld [vmem:[#allocation2 + $0x58] sm:$0xff]
    %v62 = vld [vmem:[#allocation2 + $0x60] sm:$0xff]
    %v63 = vld [vmem:[#allocation2 + $0x68] sm:$0xff]
    %v64 = vld [vmem:[#allocation2 + $0x70] sm:$0xff]
    %v65 = vld [vmem:[#allocation2 + $0x78] sm:$0xff]
    %v66 = vld [vmem:[#allocation2 + $0x80] sm:$0xff]
    %v67 = vld [vmem:[#allocation2 + $0x88] sm:$0xff]
    %v68 = vld [vmem:[#allocation2 + $0x90] sm:$0xff]
    %v69 = vld [vmem:[#allocation2 + $0x98] sm:$0xff]
    %v70 = vld [vmem:[#allocation2 + $0xa0] sm:$0xff]
    %v71 = vld [vmem:[#allocation2 + $0xa8] sm:$0xff]
    %v72 = vld [vmem:[#allocation2 + $0xb0] sm:$0xff]
    %v73 = vld [vmem:[#allocation2 + $0xb8] sm:$0xff]
    %v74 = vld [vmem:[#allocation2 + $0xc0] sm:$0xff]
    %v75 = vld [vmem:[#allocation2 + $0xc8] sm:$0xff]
    %v76 = vld [vmem:[#allocation2 + $0xd0] sm:$0xff]
    %v77 = vld [vmem:[#allocation2 + $0xd8] sm:$0xff]
    %v78 = vld [vmem:[#allocation2 + $0xe0] sm:$0xff]
    %v79 = vld [vmem:[#allocation2 + $0xe8] sm:$0xff]
    %v80 = vld [vmem:[#allocation2 + $0xf0] sm:$0xff]
    %v81 = vld [vmem:[#allocation2 + $0xf8] sm:$0xff]
    %vm82 = vcmask 261120
    %v84 = vsel %vm82, %v50, 0
    %v87 = vsel %vm82, %v51, 0
    %v90 = vsel %vm82, %v52, 0
    %v93 = vsel %vm82, %v53, 0
    %95 = vmatprep.subr.mxu0 0.0
    %96 = vmatpush1.xpose.msra.mxu0 %v84
    %97 = vmatprep.subr.mxu0 0.0
    %98 = vmatpush1.xpose.msra.mxu0 %v87
    %99 = vmatprep.subr.mxu0 0.0
    %100 = vmatpush1.xpose.msra.mxu0 %v90
    %101 = vmatprep.subr.mxu0 0.0
    %102 = vmatpush1.xpose.msra.mxu0 %v93
    %103 = vmatprep.subr.mxu0 0.0
    %104 = vmatpush1.xpose.msra.mxu0 0.0
    %105 = vmatprep.subr.mxu0 0.0
    %106 = vmatpush1.xpose.msra.mxu0 0.0
    %107 = vmatprep.subr.mxu0 0.0
    %108 = vmatpush1.xpose.msra.mxu0 0.0
    %109 = vmatprep.subr.mxu0 0.0
    %110 = vmatpush1.xpose.msra.mxu0 0.0
    %111 = vmatprep.subr.mxu0 0.0
    %112 = vmatpush1.xpose.msra.mxu0 0.0
    %113 = vmatprep.subr.mxu0 0.0
    %114 = vmatpush1.xpose.msra.mxu0 0.0
    %115 = vmatprep.subr.mxu0 0.0
    %116 = vmatpush1.xpose.msra.mxu0 0.0
    %117 = vmatprep.subr.mxu0 0.0
    %118 = vmatpush1.xpose.msra.mxu0 0.0
    %119 = vmatprep.subr.mxu0 0.0
    %120 = vmatpush1.xpose.msra.mxu0 0.0
    %121 = vmatprep.subr.mxu0 0.0
    %122 = vmatpush1.xpose.msra.mxu0 0.0
    %123 = vmatprep.subr.mxu0 0.0
    %124 = vmatpush1.xpose.msra.mxu0 0.0
    %125 = vmatprep.subr.mxu0 0.0
    %126 = vmatpush1.xpose.msra.mxu0 0.0
    %127 = vmatprep.subr.mxu0 0.0
    %128 = vmatpush1.xpose.msra.mxu0 0.0
    %129 = vmatprep.subr.mxu0 0.0
    %130 = vmatpush1.xpose.msra.mxu0 0.0
    %131 = vmatprep.subr.mxu0 0.0
    %132 = vmatpush1.xpose.msra.mxu0 0.0
    %133 = vmatprep.subr.mxu0 0.0
    %134 = vmatpush1.xpose.msra.mxu0 0.0
    %135 = vmatprep.subr.mxu0 0.0
    %136 = vmatpush1.xpose.msra.mxu0 0.0
    %137 = vmatprep.subr.mxu0 0.0
    %138 = vmatpush1.xpose.msra.mxu0 0.0
    %139 = vmatprep.subr.mxu0 0.0
    %140 = vmatpush1.xpose.msra.mxu0 0.0
    %141 = vmatprep.subr.mxu0 0.0
    %142 = vmatpush1.xpose.msra.mxu0 0.0
    %143 = vmatprep.subr.mxu0 0.0
    %144 = vmatpush1.xpose.msra.mxu0 0.0
    %145 = vmatprep.subr.mxu0 0.0
    %146 = vmatpush1.xpose.msra.mxu0 0.0
    %147 = vmatprep.subr.mxu0 0.0
    %148 = vmatpush1.xpose.msra.mxu0 0.0
    %149 = vmatprep.subr.mxu0 0.0
    %150 = vmatpush1.xpose.msra.mxu0 0.0
    %151 = vmatprep.subr.mxu0 0.0
    %152 = vmatpush1.xpose.msra.mxu0 0.0
    %153 = vmatprep.subr.mxu0 0.0
    %154 = vmatpush1.xpose.msra.mxu0 0.0
    %155 = vmatprep.subr.mxu0 0.0
    %156 = vmatpush1.xpose.msra.mxu0 0.0
    %157 = vmatprep.subr.mxu0 0.0
    %158 = vmatpush1.xpose.msra.mxu0 0.0
    %159 = vmatprep.mubr.f32.mxu0 0.0
    %160 = vmatmul.mubr.f32.gmra.mrb[0].mxu0 %v84
    %v161 = vpop.f32.mrb[0].mxu0
    %v162 = vadd.f32 0.0, %v161
    %v163 = vpop.f32.mrb[0].mxu0
    %164 = vmatprep.mubr.f32.mxu0 0.0
    %165 = vmatmul.mubr.f32.gmra.mrb[0].mxu0 %v87
    %v166 = vpop.f32.mrb[0].mxu0
    %v167 = vadd.f32 0.0, %v166
    %v168 = vpop.f32.mrb[0].mxu0
    %169 = vmatprep.mubr.f32.mxu0 0.0
    %170 = vmatmul.mubr.f32.gmra.mrb[0].mxu0 %v90
    %v171 = vpop.f32.mrb[0].mxu0
    %v172 = vadd.f32 0.0, %v171
    %v173 = vpop.f32.mrb[0].mxu0
    %174 = vmatprep.mubr.f32.mxu0 0.0
    %175 = vmatmul.mubr.f32.gmra.mrb[0].mxu0 %v93
    %v176 = vpop.f32.mrb[0].mxu0
    %v177 = vadd.f32 0.0, %v176
    %v178 = vpop.f32.mrb[0].mxu0
    %179 = vdwg.mxu0
    %v181 = vsel %vm82, %v54, 0
    %v184 = vsel %vm82, %v55, 0
    %v187 = vsel %vm82, %v56, 0
    %v190 = vsel %vm82, %v57, 0
    %192 = vmatprep.subr.mxu0 0.0
    %193 = vmatpush1.xpose.msra.mxu0 %v181
    %194 = vmatprep.subr.mxu0 0.0
    %195 = vmatpush1.xpose.msra.mxu0 %v184
    %196 = vmatprep.subr.mxu0 0.0
    %197 = vmatpush1.xpose.msra.mxu0 %v187
    %198 = vmatprep.subr.mxu0 0.0
    %199 = vmatpush1.xpose.msra.mxu0 %v190
    %200 = vmatprep.subr.mxu0 0.0
    %201 = vmatpush1.xpose.msra.mxu0 0.0
    %202 = vmatprep.subr.mxu0 0.0
    %203 = vmatpush1.xpose.msra.mxu0 0.0
    %204 = vmatprep.subr.mxu0 0.0
    %205 = vmatpush1.xpose.msra.mxu0 0.0
    %206 = vmatprep.subr.mxu0 0.0
    %207 = vmatpush1.xpose.msra.mxu0 0.0
    %208 = vmatprep.subr.mxu0 0.0
    %209 = vmatpush1.xpose.msra.mxu0 0.0
    %210 = vmatprep.subr.mxu0 0.0
    %211 = vmatpush1.xpose.msra.mxu0 0.0
    %212 = vmatprep.subr.mxu0 0.0
    %213 = vmatpush1.xpose.msra.mxu0 0.0
    %214 = vmatprep.subr.mxu0 0.0
    %215 = vmatpush1.xpose.msra.mxu0 0.0
    %216 = vmatprep.subr.mxu0 0.0
    %217 = vmatpush1.xpose.msra.mxu0 0.0
    %218 = vmatprep.subr.mxu0 0.0
    %219 = vmatpush1.xpose.msra.mxu0 0.0
    %220 = vmatprep.subr.mxu0 0.0
    %221 = vmatpush1.xpose.msra.mxu0 0.0
    %222 = vmatprep.subr.mxu0 0.0
    %223 = vmatpush1.xpose.msra.mxu0 0.0
    %224 = vmatprep.subr.mxu0 0.0
    %225 = vmatpush1.xpose.msra.mxu0 0.0
    %226 = vmatprep.subr.mxu0 0.0
    %227 = vmatpush1.xpose.msra.mxu0 0.0
    %228 = vmatprep.subr.mxu0 0.0
    %229 = vmatpush1.xpose.msra.mxu0 0.0
    %230 = vmatprep.subr.mxu0 0.0
    %231 = vmatpush1.xpose.msra.mxu0 0.0
    %232 = vmatprep.subr.mxu0 0.0
    %233 = vmatpush1.xpose.msra.mxu0 0.0
    %234 = vmatprep.subr.mxu0 0.0
    %235 = vmatpush1.xpose.msra.mxu0 0.0
    %236 = vmatprep.subr.mxu0 0.0
    %237 = vmatpush1.xpose.msra.mxu0 0.0
    %238 = vmatprep.subr.mxu0 0.0
    %239 = vmatpush1.xpose.msra.mxu0 0.0
    %240 = vmatprep.subr.mxu0 0.0
    %241 = vmatpush1.xpose.msra.mxu0 0.0
    %242 = vmatprep.subr.mxu0 0.0
    %243 = vmatpush1.xpose.msra.mxu0 0.0
    %244 = vmatprep.subr.mxu0 0.0
    %245 = vmatpush1.xpose.msra.mxu0 0.0
    %246 = vmatprep.subr.mxu0 0.0
    %247 = vmatpush1.xpose.msra.mxu0 0.0
    %248 = vmatprep.subr.mxu0 0.0
    %249 = vmatpush1.xpose.msra.mxu0 0.0
    %250 = vmatprep.subr.mxu0 0.0
    %251 = vmatpush1.xpose.msra.mxu0 0.0
    %252 = vmatprep.subr.mxu0 0.0
    %253 = vmatpush1.xpose.msra.mxu0 0.0
    %254 = vmatprep.subr.mxu0 0.0
    %255 = vmatpush1.xpose.msra.mxu0 0.0
    %256 = vmatprep.mubr.f32.mxu0 0.0
    %257 = vmatmul.mubr.f32.gmra.mrb[0].mxu0 %v181
    %v258 = vpop.f32.mrb[0].mxu0
    %v259 = vadd.f32 0.0, %v258
    %v260 = vpop.f32.mrb[0].mxu0
    %261 = vmatprep.mubr.f32.mxu0 0.0
    %262 = vmatmul.mubr.f32.gmra.mrb[0].mxu0 %v184
    %v263 = vpop.f32.mrb[0].mxu0
    %v264 = vadd.f32 0.0, %v263
    %v265 = vpop.f32.mrb[0].mxu0
    %266 = vmatprep.mubr.f32.mxu0 0.0
    %267 = vmatmul.mubr.f32.gmra.mrb[0].mxu0 %v187
    %v268 = vpop.f32.mrb[0].mxu0
    %v269 = vadd.f32 0.0, %v268
    %v270 = vpop.f32.mrb[0].mxu0
    %271 = vmatprep.mubr.f32.mxu0 0.0
    %272 = vmatmul.mubr.f32.gmra.mrb[0].mxu0 %v190
    %v273 = vpop.f32.mrb[0].mxu0
    %v274 = vadd.f32 0.0, %v273
    %v275 = vpop.f32.mrb[0].mxu0
    %276 = vdwg.mxu0
    %v278 = vsel %vm82, %v58, 0
    %v281 = vsel %vm82, %v59, 0
    %v284 = vsel %vm82, %v60, 0
    %v287 = vsel %vm82, %v61, 0
    %289 = vmatprep.subr.mxu0 0.0
    %290 = vmatpush1.xpose.msra.mxu0 %v278
    %291 = vmatprep.subr.mxu0 0.0
    %292 = vmatpush1.xpose.msra.mxu0 %v281
    %293 = vmatprep.subr.mxu0 0.0
    %294 = vmatpush1.xpose.msra.mxu0 %v284
    %295 = vmatprep.subr.mxu0 0.0
    %296 = vmatpush1.xpose.msra.mxu0 %v287
    %297 = vmatprep.subr.mxu0 0.0
    %298 = vmatpush1.xpose.msra.mxu0 0.0
    %299 = vmatprep.subr.mxu0 0.0
    %300 = vmatpush1.xpose.msra.mxu0 0.0
    %301 = vmatprep.subr.mxu0 0.0
    %302 = vmatpush1.xpose.msra.mxu0 0.0
    %303 = vmatprep.subr.mxu0 0.0
    %304 = vmatpush1.xpose.msra.mxu0 0.0
    %305 = vmatprep.subr.mxu0 0.0
    %306 = vmatpush1.xpose.msra.mxu0 0.0
    %307 = vmatprep.subr.mxu0 0.0
    %308 = vmatpush1.xpose.msra.mxu0 0.0
    %309 = vmatprep.subr.mxu0 0.0
    %310 = vmatpush1.xpose.msra.mxu0 0.0
    %311 = vmatprep.subr.mxu0 0.0
    %312 = vmatpush1.xpose.msra.mxu0 0.0
    %313 = vmatprep.subr.mxu0 0.0
    %314 = vmatpush1.xpose.msra.mxu0 0.0
    %315 = vmatprep.subr.mxu0 0.0
    %316 = vmatpush1.xpose.msra.mxu0 0.0
    %317 = vmatprep.subr.mxu0 0.0
    %318 = vmatpush1.xpose.msra.mxu0 0.0
    %319 = vmatprep.subr.mxu0 0.0
    %320 = vmatpush1.xpose.msra.mxu0 0.0
    %321 = vmatprep.subr.mxu0 0.0
    %322 = vmatpush1.xpose.msra.mxu0 0.0
    %323 = vmatprep.subr.mxu0 0.0
    %324 = vmatpush1.xpose.msra.mxu0 0.0
    %325 = vmatprep.subr.mxu0 0.0
    %326 = vmatpush1.xpose.msra.mxu0 0.0
    %327 = vmatprep.subr.mxu0 0.0
    %328 = vmatpush1.xpose.msra.mxu0 0.0
    %329 = vmatprep.subr.mxu0 0.0
    %330 = vmatpush1.xpose.msra.mxu0 0.0
    %331 = vmatprep.subr.mxu0 0.0
    %332 = vmatpush1.xpose.msra.mxu0 0.0
    %333 = vmatprep.subr.mxu0 0.0
    %334 = vmatpush1.xpose.msra.mxu0 0.0
    %335 = vmatprep.subr.mxu0 0.0
    %336 = vmatpush1.xpose.msra.mxu0 0.0
    %337 = vmatprep.subr.mxu0 0.0
    %338 = vmatpush1.xpose.msra.mxu0 0.0
    %339 = vmatprep.subr.mxu0 0.0
    %340 = vmatpush1.xpose.msra.mxu0 0.0
    %341 = vmatprep.subr.mxu0 0.0
    %342 = vmatpush1.xpose.msra.mxu0 0.0
    %343 = vmatprep.subr.mxu0 0.0
    %344 = vmatpush1.xpose.msra.mxu0 0.0
    %345 = vmatprep.subr.mxu0 0.0
    %346 = vmatpush1.xpose.msra.mxu0 0.0
    %347 = vmatprep.subr.mxu0 0.0
    %348 = vmatpush1.xpose.msra.mxu0 0.0
    %349 = vmatprep.subr.mxu0 0.0
    %350 = vmatpush1.xpose.msra.mxu0 0.0
    %351 = vmatprep.subr.mxu0 0.0
    %352 = vmatpush1.xpose.msra.mxu0 0.0
    %353 = vmatprep.mubr.f32.mxu0 0.0
    %354 = vmatmul.mubr.f32.gmra.mrb[0].mxu0 %v278
    %v355 = vpop.f32.mrb[0].mxu0
    %v356 = vadd.f32 0.0, %v355
    %v357 = vpop.f32.mrb[0].mxu0
    %358 = vmatprep.mubr.f32.mxu0 0.0
    %359 = vmatmul.mubr.f32.gmra.mrb[0].mxu0 %v281
    %v360 = vpop.f32.mrb[0].mxu0
    %v361 = vadd.f32 0.0, %v360
    %v362 = vpop.f32.mrb[0].mxu0
    %363 = vmatprep.mubr.f32.mxu0 0.0
    %364 = vmatmul.mubr.f32.gmra.mrb[0].mxu0 %v284
    %v365 = vpop.f32.mrb[0].mxu0
    %v366 = vadd.f32 0.0, %v365
    %v367 = vpop.f32.mrb[0].mxu0
    %368 = vmatprep.mubr.f32.mxu0 0.0
    %369 = vmatmul.mubr.f32.gmra.mrb[0].mxu0 %v287
    %v370 = vpop.f32.mrb[0].mxu0
    %v371 = vadd.f32 0.0, %v370
    %v372 = vpop.f32.mrb[0].mxu0
    %373 = vdwg.mxu0
    %v375 = vsel %vm82, %v62, 0
    %v378 = vsel %vm82, %v63, 0
    %v381 = vsel %vm82, %v64, 0
    %v384 = vsel %vm82, %v65, 0
    %386 = vmatprep.subr.mxu0 0.0
    %387 = vmatpush1.xpose.msra.mxu0 %v375
    %388 = vmatprep.subr.mxu0 0.0
    %389 = vmatpush1.xpose.msra.mxu0 %v378
    %390 = vmatprep.subr.mxu0 0.0
    %391 = vmatpush1.xpose.msra.mxu0 %v381
    %392 = vmatprep.subr.mxu0 0.0
    %393 = vmatpush1.xpose.msra.mxu0 %v384
    %394 = vmatprep.subr.mxu0 0.0
    %395 = vmatpush1.xpose.msra.mxu0 0.0
    %396 = vmatprep.subr.mxu0 0.0
    %397 = vmatpush1.xpose.msra.mxu0 0.0
    %398 = vmatprep.subr.mxu0 0.0
    %399 = vmatpush1.xpose.msra.mxu0 0.0
    %400 = vmatprep.subr.mxu0 0.0
    %401 = vmatpush1.xpose.msra.mxu0 0.0
    %402 = vmatprep.subr.mxu0 0.0
    %403 = vmatpush1.xpose.msra.mxu0 0.0
    %404 = vmatprep.subr.mxu0 0.0
    %405 = vmatpush1.xpose.msra.mxu0 0.0
    %406 = vmatprep.subr.mxu0 0.0
    %407 = vmatpush1.xpose.msra.mxu0 0.0
    %408 = vmatprep.subr.mxu0 0.0
    %409 = vmatpush1.xpose.msra.mxu0 0.0
    %410 = vmatprep.subr.mxu0 0.0
    %411 = vmatpush1.xpose.msra.mxu0 0.0
    %412 = vmatprep.subr.mxu0 0.0
    %413 = vmatpush1.xpose.msra.mxu0 0.0
    %414 = vmatprep.subr.mxu0 0.0
    %415 = vmatpush1.xpose.msra.mxu0 0.0
    %416 = vmatprep.subr.mxu0 0.0
    %417 = vmatpush1.xpose.msra.mxu0 0.0
    %418 = vmatprep.subr.mxu0 0.0
    %419 = vmatpush1.xpose.msra.mxu0 0.0
    %420 = vmatprep.subr.mxu0 0.0
    %421 = vmatpush1.xpose.msra.mxu0 0.0
    %422 = vmatprep.subr.mxu0 0.0
    %423 = vmatpush1.xpose.msra.mxu0 0.0
    %424 = vmatprep.subr.mxu0 0.0
    %425 = vmatpush1.xpose.msra.mxu0 0.0
    %426 = vmatprep.subr.mxu0 0.0
    %427 = vmatpush1.xpose.msra.mxu0 0.0
    %428 = vmatprep.subr.mxu0 0.0
    %429 = vmatpush1.xpose.msra.mxu0 0.0
    %430 = vmatprep.subr.mxu0 0.0
    %431 = vmatpush1.xpose.msra.mxu0 0.0
    %432 = vmatprep.subr.mxu0 0.0
    %433 = vmatpush1.xpose.msra.mxu0 0.0
    %434 = vmatprep.subr.mxu0 0.0
    %435 = vmatpush1.xpose.msra.mxu0 0.0
    %436 = vmatprep.subr.mxu0 0.0
    %437 = vmatpush1.xpose.msra.mxu0 0.0
    %438 = vmatprep.subr.mxu0 0.0
    %439 = vmatpush1.xpose.msra.mxu0 0.0
    %440 = vmatprep.subr.mxu0 0.0
    %441 = vmatpush1.xpose.msra.mxu0 0.0
    %442 = vmatprep.subr.mxu0 0.0
    %443 = vmatpush1.xpose.msra.mxu0 0.0
    %444 = vmatprep.subr.mxu0 0.0
    %445 = vmatpush1.xpose.msra.mxu0 0.0
    %446 = vmatprep.subr.mxu0 0.0
    %447 = vmatpush1.xpose.msra.mxu0 0.0
    %448 = vmatprep.subr.mxu0 0.0
    %449 = vmatpush1.xpose.msra.mxu0 0.0
    %450 = vmatprep.mubr.f32.mxu0 0.0
    %451 = vmatmul.mubr.f32.gmra.mrb[0].mxu0 %v375
    %v452 = vpop.f32.mrb[0].mxu0
    %v453 = vadd.f32 0.0, %v452
    %v454 = vpop.f32.mrb[0].mxu0
    %455 = vmatprep.mubr.f32.mxu0 0.0
    %456 = vmatmul.mubr.f32.gmra.mrb[0].mxu0 %v378
    %v457 = vpop.f32.mrb[0].mxu0
    %v458 = vadd.f32 0.0, %v457
    %v459 = vpop.f32.mrb[0].mxu0
    %460 = vmatprep.mubr.f32.mxu0 0.0
    %461 = vmatmul.mubr.f32.gmra.mrb[0].mxu0 %v381
    %v462 = vpop.f32.mrb[0].mxu0
    %v463 = vadd.f32 0.0, %v462
    %v464 = vpop.f32.mrb[0].mxu0
    %465 = vmatprep.mubr.f32.mxu0 0.0
    %466 = vmatmul.mubr.f32.gmra.mrb[0].mxu0 %v384
    %v467 = vpop.f32.mrb[0].mxu0
    %v468 = vadd.f32 0.0, %v467
    %v469 = vpop.f32.mrb[0].mxu0
    %470 = vdwg.mxu0
    %v472 = vsel %vm82, %v66, 0
    %v475 = vsel %vm82, %v67, 0
    %v478 = vsel %vm82, %v68, 0
    %v481 = vsel %vm82, %v69, 0
    %483 = vmatprep.subr.mxu0 0.0
    %484 = vmatpush1.xpose.msra.mxu0 %v472
    %485 = vmatprep.subr.mxu0 0.0
    %486 = vmatpush1.xpose.msra.mxu0 %v475
    %487 = vmatprep.subr.mxu0 0.0
    %488 = vmatpush1.xpose.msra.mxu0 %v478
    %489 = vmatprep.subr.mxu0 0.0
    %490 = vmatpush1.xpose.msra.mxu0 %v481
    %491 = vmatprep.subr.mxu0 0.0
    %492 = vmatpush1.xpose.msra.mxu0 0.0
    %493 = vmatprep.subr.mxu0 0.0
    %494 = vmatpush1.xpose.msra.mxu0 0.0
    %495 = vmatprep.subr.mxu0 0.0
    %496 = vmatpush1.xpose.msra.mxu0 0.0
    %497 = vmatprep.subr.mxu0 0.0
    %498 = vmatpush1.xpose.msra.mxu0 0.0
    %499 = vmatprep.subr.mxu0 0.0
    %500 = vmatpush1.xpose.msra.mxu0 0.0
    %501 = vmatprep.subr.mxu0 0.0
    %502 = vmatpush1.xpose.msra.mxu0 0.0
    %503 = vmatprep.subr.mxu0 0.0
    %504 = vmatpush1.xpose.msra.mxu0 0.0
    %505 = vmatprep.subr.mxu0 0.0
    %506 = vmatpush1.xpose.msra.mxu0 0.0
    %507 = vmatprep.subr.mxu0 0.0
    %508 = vmatpush1.xpose.msra.mxu0 0.0
    %509 = vmatprep.subr.mxu0 0.0
    %510 = vmatpush1.xpose.msra.mxu0 0.0
    %511 = vmatprep.subr.mxu0 0.0
    %512 = vmatpush1.xpose.msra.mxu0 0.0
    %513 = vmatprep.subr.mxu0 0.0
    %514 = vmatpush1.xpose.msra.mxu0 0.0
    %515 = vmatprep.subr.mxu0 0.0
    %516 = vmatpush1.xpose.msra.mxu0 0.0
    %517 = vmatprep.subr.mxu0 0.0
    %518 = vmatpush1.xpose.msra.mxu0 0.0
    %519 = vmatprep.subr.mxu0 0.0
    %520 = vmatpush1.xpose.msra.mxu0 0.0
    %521 = vmatprep.subr.mxu0 0.0
    %522 = vmatpush1.xpose.msra.mxu0 0.0
    %523 = vmatprep.subr.mxu0 0.0
    %524 = vmatpush1.xpose.msra.mxu0 0.0
    %525 = vmatprep.subr.mxu0 0.0
    %526 = vmatpush1.xpose.msra.mxu0 0.0
    %527 = vmatprep.subr.mxu0 0.0
    %528 = vmatpush1.xpose.msra.mxu0 0.0
    %529 = vmatprep.subr.mxu0 0.0
    %530 = vmatpush1.xpose.msra.mxu0 0.0
    %531 = vmatprep.subr.mxu0 0.0
    %532 = vmatpush1.xpose.msra.mxu0 0.0
    %533 = vmatprep.subr.mxu0 0.0
    %534 = vmatpush1.xpose.msra.mxu0 0.0
    %535 = vmatprep.subr.mxu0 0.0
    %536 = vmatpush1.xpose.msra.mxu0 0.0
    %537 = vmatprep.subr.mxu0 0.0
    %538 = vmatpush1.xpose.msra.mxu0 0.0
    %539 = vmatprep.subr.mxu0 0.0
    %540 = vmatpush1.xpose.msra.mxu0 0.0
    %541 = vmatprep.subr.mxu0 0.0
    %542 = vmatpush1.xpose.msra.mxu0 0.0
    %543 = vmatprep.subr.mxu0 0.0
    %544 = vmatpush1.xpose.msra.mxu0 0.0
    %545 = vmatprep.subr.mxu0 0.0
    %546 = vmatpush1.xpose.msra.mxu0 0.0
    %547 = vmatprep.mubr.f32.mxu0 0.0
    %548 = vmatmul.mubr.f32.gmra.mrb[0].mxu0 %v472
    %v549 = vpop.f32.mrb[0].mxu0
    %v550 = vadd.f32 0.0, %v549
    %v551 = vpop.f32.mrb[0].mxu0
    %552 = vmatprep.mubr.f32.mxu0 0.0
    %553 = vmatmul.mubr.f32.gmra.mrb[0].mxu0 %v475
    %v554 = vpop.f32.mrb[0].mxu0
    %v555 = vadd.f32 0.0, %v554
    %v556 = vpop.f32.mrb[0].mxu0
    %557 = vmatprep.mubr.f32.mxu0 0.0
    %558 = vmatmul.mubr.f32.gmra.mrb[0].mxu0 %v478
    %v559 = vpop.f32.mrb[0].mxu0
    %v560 = vadd.f32 0.0, %v559
    %v561 = vpop.f32.mrb[0].mxu0
    %562 = vmatprep.mubr.f32.mxu0 0.0
    %563 = vmatmul.mubr.f32.gmra.mrb[0].mxu0 %v481
    %v564 = vpop.f32.mrb[0].mxu0
    %v565 = vadd.f32 0.0, %v564
    %v566 = vpop.f32.mrb[0].mxu0
    %567 = vdwg.mxu0
    %v569 = vsel %vm82, %v70, 0
    %v572 = vsel %vm82, %v71, 0
    %v575 = vsel %vm82, %v72, 0
    %v578 = vsel %vm82, %v73, 0
    %580 = vmatprep.subr.mxu0 0.0
    %581 = vmatpush1.xpose.msra.mxu0 %v569
    %582 = vmatprep.subr.mxu0 0.0
    %583 = vmatpush1.xpose.msra.mxu0 %v572
    %584 = vmatprep.subr.mxu0 0.0
    %585 = vmatpush1.xpose.msra.mxu0 %v575
    %586 = vmatprep.subr.mxu0 0.0
    %587 = vmatpush1.xpose.msra.mxu0 %v578
    %588 = vmatprep.subr.mxu0 0.0
    %589 = vmatpush1.xpose.msra.mxu0 0.0
    %590 = vmatprep.subr.mxu0 0.0
    %591 = vmatpush1.xpose.msra.mxu0 0.0
    %592 = vmatprep.subr.mxu0 0.0
    %593 = vmatpush1.xpose.msra.mxu0 0.0
    %594 = vmatprep.subr.mxu0 0.0
    %595 = vmatpush1.xpose.msra.mxu0 0.0
    %596 = vmatprep.subr.mxu0 0.0
    %597 = vmatpush1.xpose.msra.mxu0 0.0
    %598 = vmatprep.subr.mxu0 0.0
    %599 = vmatpush1.xpose.msra.mxu0 0.0
    %600 = vmatprep.subr.mxu0 0.0
    %601 = vmatpush1.xpose.msra.mxu0 0.0
    %602 = vmatprep.subr.mxu0 0.0
    %603 = vmatpush1.xpose.msra.mxu0 0.0
    %604 = vmatprep.subr.mxu0 0.0
    %605 = vmatpush1.xpose.msra.mxu0 0.0
    %606 = vmatprep.subr.mxu0 0.0
    %607 = vmatpush1.xpose.msra.mxu0 0.0
    %608 = vmatprep.subr.mxu0 0.0
    %609 = vmatpush1.xpose.msra.mxu0 0.0
    %610 = vmatprep.subr.mxu0 0.0
    %611 = vmatpush1.xpose.msra.mxu0 0.0
    %612 = vmatprep.subr.mxu0 0.0
    %613 = vmatpush1.xpose.msra.mxu0 0.0
    %614 = vmatprep.subr.mxu0 0.0
    %615 = vmatpush1.xpose.msra.mxu0 0.0
    %616 = vmatprep.subr.mxu0 0.0
    %617 = vmatpush1.xpose.msra.mxu0 0.0
    %618 = vmatprep.subr.mxu0 0.0
    %619 = vmatpush1.xpose.msra.mxu0 0.0
    %620 = vmatprep.subr.mxu0 0.0
    %621 = vmatpush1.xpose.msra.mxu0 0.0
    %622 = vmatprep.subr.mxu0 0.0
    %623 = vmatpush1.xpose.msra.mxu0 0.0
    %624 = vmatprep.subr.mxu0 0.0
    %625 = vmatpush1.xpose.msra.mxu0 0.0
    %626 = vmatprep.subr.mxu0 0.0
    %627 = vmatpush1.xpose.msra.mxu0 0.0
    %628 = vmatprep.subr.mxu0 0.0
    %629 = vmatpush1.xpose.msra.mxu0 0.0
    %630 = vmatprep.subr.mxu0 0.0
    %631 = vmatpush1.xpose.msra.mxu0 0.0
    %632 = vmatprep.subr.mxu0 0.0
    %633 = vmatpush1.xpose.msra.mxu0 0.0
    %634 = vmatprep.subr.mxu0 0.0
    %635 = vmatpush1.xpose.msra.mxu0 0.0
    %636 = vmatprep.subr.mxu0 0.0
    %637 = vmatpush1.xpose.msra.mxu0 0.0
    %638 = vmatprep.subr.mxu0 0.0
    %639 = vmatpush1.xpose.msra.mxu0 0.0
    %640 = vmatprep.subr.mxu0 0.0
    %641 = vmatpush1.xpose.msra.mxu0 0.0
    %642 = vmatprep.subr.mxu0 0.0
    %643 = vmatpush1.xpose.msra.mxu0 0.0
    %644 = vmatprep.mubr.f32.mxu0 0.0
    %645 = vmatmul.mubr.f32.gmra.mrb[0].mxu0 %v569
    %v646 = vpop.f32.mrb[0].mxu0
    %v647 = vadd.f32 0.0, %v646
    %v648 = vpop.f32.mrb[0].mxu0
    %649 = vmatprep.mubr.f32.mxu0 0.0
    %650 = vmatmul.mubr.f32.gmra.mrb[0].mxu0 %v572
    %v651 = vpop.f32.mrb[0].mxu0
    %v652 = vadd.f32 0.0, %v651
    %v653 = vpop.f32.mrb[0].mxu0
    %654 = vmatprep.mubr.f32.mxu0 0.0
    %655 = vmatmul.mubr.f32.gmra.mrb[0].mxu0 %v575
    %v656 = vpop.f32.mrb[0].mxu0
    %v657 = vadd.f32 0.0, %v656
    %v658 = vpop.f32.mrb[0].mxu0
    %659 = vmatprep.mubr.f32.mxu0 0.0
    %660 = vmatmul.mubr.f32.gmra.mrb[0].mxu0 %v578
    %v661 = vpop.f32.mrb[0].mxu0
    %v662 = vadd.f32 0.0, %v661
    %v663 = vpop.f32.mrb[0].mxu0
    %664 = vdwg.mxu0
    %v666 = vsel %vm82, %v74, 0
    %v669 = vsel %vm82, %v75, 0
    %v672 = vsel %vm82, %v76, 0
    %v675 = vsel %vm82, %v77, 0
    %677 = vmatprep.subr.mxu0 0.0
    %678 = vmatpush1.xpose.msra.mxu0 %v666
    %679 = vmatprep.subr.mxu0 0.0
    %680 = vmatpush1.xpose.msra.mxu0 %v669
    %681 = vmatprep.subr.mxu0 0.0
    %682 = vmatpush1.xpose.msra.mxu0 %v672
    %683 = vmatprep.subr.mxu0 0.0
    %684 = vmatpush1.xpose.msra.mxu0 %v675
    %685 = vmatprep.subr.mxu0 0.0
    %686 = vmatpush1.xpose.msra.mxu0 0.0
    %687 = vmatprep.subr.mxu0 0.0
    %688 = vmatpush1.xpose.msra.mxu0 0.0
    %689 = vmatprep.subr.mxu0 0.0
    %690 = vmatpush1.xpose.msra.mxu0 0.0
    %691 = vmatprep.subr.mxu0 0.0
    %692 = vmatpush1.xpose.msra.mxu0 0.0
    %693 = vmatprep.subr.mxu0 0.0
    %694 = vmatpush1.xpose.msra.mxu0 0.0
    %695 = vmatprep.subr.mxu0 0.0
    %696 = vmatpush1.xpose.msra.mxu0 0.0
    %697 = vmatprep.subr.mxu0 0.0
    %698 = vmatpush1.xpose.msra.mxu0 0.0
    %699 = vmatprep.subr.mxu0 0.0
    %700 = vmatpush1.xpose.msra.mxu0 0.0
    %701 = vmatprep.subr.mxu0 0.0
    %702 = vmatpush1.xpose.msra.mxu0 0.0
    %703 = vmatprep.subr.mxu0 0.0
    %704 = vmatpush1.xpose.msra.mxu0 0.0
    %705 = vmatprep.subr.mxu0 0.0
    %706 = vmatpush1.xpose.msra.mxu0 0.0
    %707 = vmatprep.subr.mxu0 0.0
    %708 = vmatpush1.xpose.msra.mxu0 0.0
    %709 = vmatprep.subr.mxu0 0.0
    %710 = vmatpush1.xpose.msra.mxu0 0.0
    %711 = vmatprep.subr.mxu0 0.0
    %712 = vmatpush1.xpose.msra.mxu0 0.0
    %713 = vmatprep.subr.mxu0 0.0
    %714 = vmatpush1.xpose.msra.mxu0 0.0
    %715 = vmatprep.subr.mxu0 0.0
    %716 = vmatpush1.xpose.msra.mxu0 0.0
    %717 = vmatprep.subr.mxu0 0.0
    %718 = vmatpush1.xpose.msra.mxu0 0.0
    %719 = vmatprep.subr.mxu0 0.0
    %720 = vmatpush1.xpose.msra.mxu0 0.0
    %721 = vmatprep.subr.mxu0 0.0
    %722 = vmatpush1.xpose.msra.mxu0 0.0
    %723 = vmatprep.subr.mxu0 0.0
    %724 = vmatpush1.xpose.msra.mxu0 0.0
    %725 = vmatprep.subr.mxu0 0.0
    %726 = vmatpush1.xpose.msra.mxu0 0.0
    %727 = vmatprep.subr.mxu0 0.0
    %728 = vmatpush1.xpose.msra.mxu0 0.0
    %729 = vmatprep.subr.mxu0 0.0
    %730 = vmatpush1.xpose.msra.mxu0 0.0
    %731 = vmatprep.subr.mxu0 0.0
    %732 = vmatpush1.xpose.msra.mxu0 0.0
    %733 = vmatprep.subr.mxu0 0.0
    %734 = vmatpush1.xpose.msra.mxu0 0.0
    %735 = vmatprep.subr.mxu0 0.0
    %736 = vmatpush1.xpose.msra.mxu0 0.0
    %737 = vmatprep.subr.mxu0 0.0
    %738 = vmatpush1.xpose.msra.mxu0 0.0
    %739 = vmatprep.subr.mxu0 0.0
    %740 = vmatpush1.xpose.msra.mxu0 0.0
    %741 = vmatprep.mubr.f32.mxu0 0.0
    %742 = vmatmul.mubr.f32.gmra.mrb[0].mxu0 %v666
    %v743 = vpop.f32.mrb[0].mxu0
    %v744 = vadd.f32 0.0, %v743
    %v745 = vpop.f32.mrb[0].mxu0
    %746 = vmatprep.mubr.f32.mxu0 0.0
    %747 = vmatmul.mubr.f32.gmra.mrb[0].mxu0 %v669
    %v748 = vpop.f32.mrb[0].mxu0
    %v749 = vadd.f32 0.0, %v748
    %v750 = vpop.f32.mrb[0].mxu0
    %751 = vmatprep.mubr.f32.mxu0 0.0
    %752 = vmatmul.mubr.f32.gmra.mrb[0].mxu0 %v672
    %v753 = vpop.f32.mrb[0].mxu0
    %v754 = vadd.f32 0.0, %v753
    %v755 = vpop.f32.mrb[0].mxu0
    %756 = vmatprep.mubr.f32.mxu0 0.0
    %757 = vmatmul.mubr.f32.gmra.mrb[0].mxu0 %v675
    %v758 = vpop.f32.mrb[0].mxu0
    %v759 = vadd.f32 0.0, %v758
    %v760 = vpop.f32.mrb[0].mxu0
    %761 = vdwg.mxu0
    %v763 = vsel %vm82, %v78, 0
    %v766 = vsel %vm82, %v79, 0
    %v769 = vsel %vm82, %v80, 0
    %v772 = vsel %vm82, %v81, 0
    %774 = vmatprep.subr.mxu0 0.0
    %775 = vmatpush1.xpose.msra.mxu0 %v763
    %776 = vmatprep.subr.mxu0 0.0
    %777 = vmatpush1.xpose.msra.mxu0 %v766
    %778 = vmatprep.subr.mxu0 0.0
    %779 = vmatpush1.xpose.msra.mxu0 %v769
    %780 = vmatprep.subr.mxu0 0.0
    %781 = vmatpush1.xpose.msra.mxu0 %v772
    %782 = vmatprep.subr.mxu0 0.0
    %783 = vmatpush1.xpose.msra.mxu0 0.0
    %784 = vmatprep.subr.mxu0 0.0
    %785 = vmatpush1.xpose.msra.mxu0 0.0
    %786 = vmatprep.subr.mxu0 0.0
    %787 = vmatpush1.xpose.msra.mxu0 0.0
    %788 = vmatprep.subr.mxu0 0.0
    %789 = vmatpush1.xpose.msra.mxu0 0.0
    %790 = vmatprep.subr.mxu0 0.0
    %791 = vmatpush1.xpose.msra.mxu0 0.0
    %792 = vmatprep.subr.mxu0 0.0
    %793 = vmatpush1.xpose.msra.mxu0 0.0
    %794 = vmatprep.subr.mxu0 0.0
    %795 = vmatpush1.xpose.msra.mxu0 0.0
    %796 = vmatprep.subr.mxu0 0.0
    %797 = vmatpush1.xpose.msra.mxu0 0.0
    %798 = vmatprep.subr.mxu0 0.0
    %799 = vmatpush1.xpose.msra.mxu0 0.0
    %800 = vmatprep.subr.mxu0 0.0
    %801 = vmatpush1.xpose.msra.mxu0 0.0
    %802 = vmatprep.subr.mxu0 0.0
    %803 = vmatpush1.xpose.msra.mxu0 0.0
    %804 = vmatprep.subr.mxu0 0.0
    %805 = vmatpush1.xpose.msra.mxu0 0.0
    %806 = vmatprep.subr.mxu0 0.0
    %807 = vmatpush1.xpose.msra.mxu0 0.0
    %808 = vmatprep.subr.mxu0 0.0
    %809 = vmatpush1.xpose.msra.mxu0 0.0
    %810 = vmatprep.subr.mxu0 0.0
    %811 = vmatpush1.xpose.msra.mxu0 0.0
    %812 = vmatprep.subr.mxu0 0.0
    %813 = vmatpush1.xpose.msra.mxu0 0.0
    %814 = vmatprep.subr.mxu0 0.0
    %815 = vmatpush1.xpose.msra.mxu0 0.0
    %816 = vmatprep.subr.mxu0 0.0
    %817 = vmatpush1.xpose.msra.mxu0 0.0
    %818 = vmatprep.subr.mxu0 0.0
    %819 = vmatpush1.xpose.msra.mxu0 0.0
    %820 = vmatprep.subr.mxu0 0.0
    %821 = vmatpush1.xpose.msra.mxu0 0.0
    %822 = vmatprep.subr.mxu0 0.0
    %823 = vmatpush1.xpose.msra.mxu0 0.0
    %824 = vmatprep.subr.mxu0 0.0
    %825 = vmatpush1.xpose.msra.mxu0 0.0
    %826 = vmatprep.subr.mxu0 0.0
    %827 = vmatpush1.xpose.msra.mxu0 0.0
    %828 = vmatprep.subr.mxu0 0.0
    %829 = vmatpush1.xpose.msra.mxu0 0.0
    %830 = vmatprep.subr.mxu0 0.0
    %831 = vmatpush1.xpose.msra.mxu0 0.0
    %832 = vmatprep.subr.mxu0 0.0
    %833 = vmatpush1.xpose.msra.mxu0 0.0
    %834 = vmatprep.subr.mxu0 0.0
    %835 = vmatpush1.xpose.msra.mxu0 0.0
    %836 = vmatprep.subr.mxu0 0.0
    %837 = vmatpush1.xpose.msra.mxu0 0.0
    %838 = vmatprep.mubr.f32.mxu0 0.0
    %839 = vmatmul.mubr.f32.gmra.mrb[0].mxu0 %v763
    %v840 = vpop.f32.mrb[0].mxu0
    %v841 = vadd.f32 0.0, %v840
    %v842 = vpop.f32.mrb[0].mxu0
    %843 = vmatprep.mubr.f32.mxu0 0.0
    %844 = vmatmul.mubr.f32.gmra.mrb[0].mxu0 %v766
    %v845 = vpop.f32.mrb[0].mxu0
    %v846 = vadd.f32 0.0, %v845
    %v847 = vpop.f32.mrb[0].mxu0
    %848 = vmatprep.mubr.f32.mxu0 0.0
    %849 = vmatmul.mubr.f32.gmra.mrb[0].mxu0 %v769
    %v850 = vpop.f32.mrb[0].mxu0
    %v851 = vadd.f32 0.0, %v850
    %v852 = vpop.f32.mrb[0].mxu0
    %853 = vmatprep.mubr.f32.mxu0 0.0
    %854 = vmatmul.mubr.f32.gmra.mrb[0].mxu0 %v772
    %v855 = vpop.f32.mrb[0].mxu0
    %v856 = vadd.f32 0.0, %v855
    %v857 = vpop.f32.mrb[0].mxu0
    %858 = vdwg.mxu0
    %v859 = vlaneseq
    %v860 = vshrl.u32 %v859, 7
    %v861 = vadd.s32 %v860, 8
    %v862 = vadd.s32 %v860, 16
    %v863 = vadd.s32 %v860, 24
    %vm864 = vcmp.eq.s32.totalorder %v860, %v32
    %vm865 = vcmp.eq.s32.totalorder %v861, %v32
    %vm866 = vcmp.eq.s32.totalorder %v862, %v32
    %vm867 = vcmp.eq.s32.totalorder %v863, %v32
    %v868 = vsel %vm864, 1.0, 0.0
    %v869 = vsel %vm865, 1.0, 0.0
    %v870 = vsel %vm866, 1.0, 0.0
    %v871 = vsel %vm867, 1.0, 0.0
    %v872 = vsub.f32 %v162, %v868
    %v873 = vsub.f32 %v167, %v869
    %v874 = vsub.f32 %v172, %v870
    %v875 = vsub.f32 %v177, %v871
    %v876 = vsub.f32 %v259, %v868
    %v877 = vsub.f32 %v264, %v869
    %v878 = vsub.f32 %v269, %v870
    %v879 = vsub.f32 %v274, %v871
    %v880 = vsub.f32 %v356, %v868
    %v881 = vsub.f32 %v361, %v869
    %v882 = vsub.f32 %v366, %v870
    %v883 = vsub.f32 %v371, %v871
    %v884 = vsub.f32 %v453, %v868
    %v885 = vsub.f32 %v458, %v869
    %v886 = vsub.f32 %v463, %v870
    %v887 = vsub.f32 %v468, %v871
    %v888 = vsub.f32 %v550, %v868
    %v889 = vsub.f32 %v555, %v869
    %v890 = vsub.f32 %v560, %v870
    %v891 = vsub.f32 %v565, %v871
    %v892 = vsub.f32 %v647, %v868
    %v893 = vsub.f32 %v652, %v869
    %v894 = vsub.f32 %v657, %v870
    %v895 = vsub.f32 %v662, %v871
    %v896 = vsub.f32 %v744, %v868
    %v897 = vsub.f32 %v749, %v869
    %v898 = vsub.f32 %v754, %v870
    %v899 = vsub.f32 %v759, %v871
    %v900 = vsub.f32 %v841, %v868
    %v901 = vsub.f32 %v846, %v869
    %v902 = vsub.f32 %v851, %v870
    %v903 = vsub.f32 %v856, %v871
    %v904 = vmul.f32 %v872, %v872
    %v905 = vmul.f32 %v873, %v873
    %v906 = vmul.f32 %v874, %v874
    %v907 = vmul.f32 %v875, %v875
    %v908 = vmul.f32 %v876, %v876
    %v909 = vmul.f32 %v877, %v877
    %v910 = vmul.f32 %v878, %v878
    %v911 = vmul.f32 %v879, %v879
    %v912 = vmul.f32 %v880, %v880
    %v913 = vmul.f32 %v881, %v881
    %v914 = vmul.f32 %v882, %v882
    %v915 = vmul.f32 %v883, %v883
    %v916 = vmul.f32 %v884, %v884
    %v917 = vmul.f32 %v885, %v885
    %v918 = vmul.f32 %v886, %v886
    %v919 = vmul.f32 %v887, %v887
    %v920 = vmul.f32 %v888, %v888
    %v921 = vmul.f32 %v889, %v889
    %v922 = vmul.f32 %v890, %v890
    %v923 = vmul.f32 %v891, %v891
    %v924 = vmul.f32 %v892, %v892
    %v925 = vmul.f32 %v893, %v893
    %v926 = vmul.f32 %v894, %v894
    %v927 = vmul.f32 %v895, %v895
    %v928 = vmul.f32 %v896, %v896
    %v929 = vmul.f32 %v897, %v897
    %v930 = vmul.f32 %v898, %v898
    %v931 = vmul.f32 %v899, %v899
    %v932 = vmul.f32 %v900, %v900
    %v933 = vmul.f32 %v901, %v901
    %v934 = vmul.f32 %v902, %v902
    %v935 = vmul.f32 %v903, %v903
    %v936 = vsel %vm82, %v904, 0.0
    %937 = vadd.xlane.f32.xlu0 %v936
    %v938 = vpop.xlane.xlu0 %937
    %v939 = vsel %vm82, %v905, 0.0
    %940 = vadd.xlane.f32.xlu0 %v939
    %v941 = vpop.xlane.xlu0 %940
    %v942 = vsel %vm82, %v906, 0.0
    %943 = vadd.xlane.f32.xlu0 %v942
    %v944 = vpop.xlane.xlu0 %943
    %v945 = vsel %vm82, %v907, 0.0
    %946 = vadd.xlane.f32.xlu0 %v945
    %v947 = vpop.xlane.xlu0 %946
    %v948 = vsel %vm82, %v908, 0.0
    %949 = vadd.xlane.f32.xlu0 %v948
    %v950 = vpop.xlane.xlu0 %949
    %v951 = vsel %vm82, %v909, 0.0
    %952 = vadd.xlane.f32.xlu0 %v951
    %v953 = vpop.xlane.xlu0 %952
    %v954 = vsel %vm82, %v910, 0.0
    %955 = vadd.xlane.f32.xlu0 %v954
    %v956 = vpop.xlane.xlu0 %955
    %v957 = vsel %vm82, %v911, 0.0
    %958 = vadd.xlane.f32.xlu0 %v957
    %v959 = vpop.xlane.xlu0 %958
    %v960 = vsel %vm82, %v912, 0.0
    %961 = vadd.xlane.f32.xlu0 %v960
    %v962 = vpop.xlane.xlu0 %961
    %v963 = vsel %vm82, %v913, 0.0
    %964 = vadd.xlane.f32.xlu0 %v963
    %v965 = vpop.xlane.xlu0 %964
    %v966 = vsel %vm82, %v914, 0.0
    %967 = vadd.xlane.f32.xlu0 %v966
    %v968 = vpop.xlane.xlu0 %967
    %v969 = vsel %vm82, %v915, 0.0
    %970 = vadd.xlane.f32.xlu0 %v969
    %v971 = vpop.xlane.xlu0 %970
    %v972 = vsel %vm82, %v916, 0.0
    %973 = vadd.xlane.f32.xlu0 %v972
    %v974 = vpop.xlane.xlu0 %973
    %v975 = vsel %vm82, %v917, 0.0
    %976 = vadd.xlane.f32.xlu0 %v975
    %v977 = vpop.xlane.xlu0 %976
    %v978 = vsel %vm82, %v918, 0.0
    %979 = vadd.xlane.f32.xlu0 %v978
    %v980 = vpop.xlane.xlu0 %979
    %v981 = vsel %vm82, %v919, 0.0
    %982 = vadd.xlane.f32.xlu0 %v981
    %v983 = vpop.xlane.xlu0 %982
    %v984 = vsel %vm82, %v920, 0.0
    %985 = vadd.xlane.f32.xlu0 %v984
    %v986 = vpop.xlane.xlu0 %985
    %v987 = vsel %vm82, %v921, 0.0
    %988 = vadd.xlane.f32.xlu0 %v987
    %v989 = vpop.xlane.xlu0 %988
    %v990 = vsel %vm82, %v922, 0.0
    %991 = vadd.xlane.f32.xlu0 %v990
    %v992 = vpop.xlane.xlu0 %991
    %v993 = vsel %vm82, %v923, 0.0
    %994 = vadd.xlane.f32.xlu0 %v993
    %v995 = vpop.xlane.xlu0 %994
    %v996 = vsel %vm82, %v924, 0.0
    %997 = vadd.xlane.f32.xlu0 %v996
    %v998 = vpop.xlane.xlu0 %997
    %v999 = vsel %vm82, %v925, 0.0
    %1000 = vadd.xlane.f32.xlu0 %v999
    %v1001 = vpop.xlane.xlu0 %1000
    %v1002 = vsel %vm82, %v926, 0.0
    %1003 = vadd.xlane.f32.xlu0 %v1002
    %v1004 = vpop.xlane.xlu0 %1003
    %v1005 = vsel %vm82, %v927, 0.0
    %1006 = vadd.xlane.f32.xlu0 %v1005
    %v1007 = vpop.xlane.xlu0 %1006
    %v1008 = vsel %vm82, %v928, 0.0
    %1009 = vadd.xlane.f32.xlu0 %v1008
    %v1010 = vpop.xlane.xlu0 %1009
    %v1011 = vsel %vm82, %v929, 0.0
    %1012 = vadd.xlane.f32.xlu0 %v1011
    %v1013 = vpop.xlane.xlu0 %1012
    %v1014 = vsel %vm82, %v930, 0.0
    %1015 = vadd.xlane.f32.xlu0 %v1014
    %v1016 = vpop.xlane.xlu0 %1015
    %v1017 = vsel %vm82, %v931, 0.0
    %1018 = vadd.xlane.f32.xlu0 %v1017
    %v1019 = vpop.xlane.xlu0 %1018
    %v1020 = vsel %vm82, %v932, 0.0
    %1021 = vadd.xlane.f32.xlu0 %v1020
    %v1022 = vpop.xlane.xlu0 %1021
    %v1023 = vsel %vm82, %v933, 0.0
    %1024 = vadd.xlane.f32.xlu0 %v1023
    %v1025 = vpop.xlane.xlu0 %1024
    %v1026 = vsel %vm82, %v934, 0.0
    %1027 = vadd.xlane.f32.xlu0 %v1026
    %v1028 = vpop.xlane.xlu0 %1027
    %v1029 = vsel %vm82, %v935, 0.0
    %1030 = vadd.xlane.f32.xlu0 %v1029
    %v1031 = vpop.xlane.xlu0 %1030
    %v1064 = vlaneseq
    %v1065 = vshrl.u32 %v1064, 7
    %v1066 = vsub.s32 %v32, %v1065
    %v1067 = vrot.slane %v938, %v1066
    %v1068 = vadd.s32 %v32, 4294967288
    %v1069 = vlaneseq
    %v1070 = vshrl.u32 %v1069, 7
    %v1071 = vsub.s32 %v1068, %v1070
    %v1072 = vrot.slane %v941, %v1071
    %vm1073 = vcmask 130112
    %v1074 = vsel %vm1073, %v1072, %v1067
    %v1075 = vadd.s32 %v32, 4294967280
    %v1076 = vlaneseq
    %v1077 = vshrl.u32 %v1076, 7
    %v1078 = vsub.s32 %v1075, %v1077
    %v1079 = vrot.slane %v944, %v1078
    %vm1080 = vcmask 195712
    %v1081 = vsel %vm1080, %v1079, %v1074
    %v1082 = vadd.s32 %v32, 4294967272
    %v1083 = vlaneseq
    %v1084 = vshrl.u32 %v1083, 7
    %v1085 = vsub.s32 %v1082, %v1084
    %v1086 = vrot.slane %v947, %v1085
    %vm1087 = vcmask 261312
    %v1088 = vsel %vm1087, %v1086, %v1081
    %v1089 = vlaneseq
    %v1090 = vshrl.u32 %v1089, 7
    %v1091 = vsub.s32 %v32, %v1090
    %v1092 = vrot.slane %v950, %v1091
    %v1093 = vlaneseq
    %v1094 = vshrl.u32 %v1093, 7
    %v1095 = vsub.s32 %v1068, %v1094
    %v1096 = vrot.slane %v953, %v1095
    %v1097 = vsel %vm1073, %v1096, %v1092
    %v1098 = vlaneseq
    %v1099 = vshrl.u32 %v1098, 7
    %v1100 = vsub.s32 %v1075, %v1099
    %v1101 = vrot.slane %v956, %v1100
    %v1102 = vsel %vm1080, %v1101, %v1097
    %v1103 = vlaneseq
    %v1104 = vshrl.u32 %v1103, 7
    %v1105 = vsub.s32 %v1082, %v1104
    %v1106 = vrot.slane %v959, %v1105
    %v1107 = vsel %vm1087, %v1106, %v1102
    %v1108 = vlaneseq
    %v1109 = vshrl.u32 %v1108, 7
    %v1110 = vsub.s32 %v32, %v1109
    %v1111 = vrot.slane %v962, %v1110
    %v1112 = vlaneseq
    %v1113 = vshrl.u32 %v1112, 7
    %v1114 = vsub.s32 %v1068, %v1113
    %v1115 = vrot.slane %v965, %v1114
    %v1116 = vsel %vm1073, %v1115, %v1111
    %v1117 = vlaneseq
    %v1118 = vshrl.u32 %v1117, 7
    %v1119 = vsub.s32 %v1075, %v1118
    %v1120 = vrot.slane %v968, %v1119
    %v1121 = vsel %vm1080, %v1120, %v1116
    %v1122 = vlaneseq
    %v1123 = vshrl.u32 %v1122, 7
    %v1124 = vsub.s32 %v1082, %v1123
    %v1125 = vrot.slane %v971, %v1124
    %v1126 = vsel %vm1087, %v1125, %v1121
    %v1127 = vlaneseq
    %v1128 = vshrl.u32 %v1127, 7
    %v1129 = vsub.s32 %v32, %v1128
    %v1130 = vrot.slane %v974, %v1129
    %v1131 = vlaneseq
    %v1132 = vshrl.u32 %v1131, 7
    %v1133 = vsub.s32 %v1068, %v1132
    %v1134 = vrot.slane %v977, %v1133
    %v1135 = vsel %vm1073, %v1134, %v1130
    %v1136 = vlaneseq
    %v1137 = vshrl.u32 %v1136, 7
    %v1138 = vsub.s32 %v1075, %v1137
    %v1139 = vrot.slane %v980, %v1138
    %v1140 = vsel %vm1080, %v1139, %v1135
    %v1141 = vlaneseq
    %v1142 = vshrl.u32 %v1141, 7
    %v1143 = vsub.s32 %v1082, %v1142
    %v1144 = vrot.slane %v983, %v1143
    %v1145 = vsel %vm1087, %v1144, %v1140
    %v1146 = vlaneseq
    %v1147 = vshrl.u32 %v1146, 7
    %v1148 = vsub.s32 %v32, %v1147
    %v1149 = vrot.slane %v986, %v1148
    %v1150 = vlaneseq
    %v1151 = vshrl.u32 %v1150, 7
    %v1152 = vsub.s32 %v1068, %v1151
    %v1153 = vrot.slane %v989, %v1152
    %v1154 = vsel %vm1073, %v1153, %v1149
    %v1155 = vlaneseq
    %v1156 = vshrl.u32 %v1155, 7
    %v1157 = vsub.s32 %v1075, %v1156
    %v1158 = vrot.slane %v992, %v1157
    %v1159 = vsel %vm1080, %v1158, %v1154
    %v1160 = vlaneseq
    %v1161 = vshrl.u32 %v1160, 7
    %v1162 = vsub.s32 %v1082, %v1161
    %v1163 = vrot.slane %v995, %v1162
    %v1164 = vsel %vm1087, %v1163, %v1159
    %v1165 = vlaneseq
    %v1166 = vshrl.u32 %v1165, 7
    %v1167 = vsub.s32 %v32, %v1166
    %v1168 = vrot.slane %v998, %v1167
    %v1169 = vlaneseq
    %v1170 = vshrl.u32 %v1169, 7
    %v1171 = vsub.s32 %v1068, %v1170
    %v1172 = vrot.slane %v1001, %v1171
    %v1173 = vsel %vm1073, %v1172, %v1168
    %v1174 = vlaneseq
    %v1175 = vshrl.u32 %v1174, 7
    %v1176 = vsub.s32 %v1075, %v1175
    %v1177 = vrot.slane %v1004, %v1176
    %v1178 = vsel %vm1080, %v1177, %v1173
    %v1179 = vlaneseq
    %v1180 = vshrl.u32 %v1179, 7
    %v1181 = vsub.s32 %v1082, %v1180
    %v1182 = vrot.slane %v1007, %v1181
    %v1183 = vsel %vm1087, %v1182, %v1178
    %v1184 = vlaneseq
    %v1185 = vshrl.u32 %v1184, 7
    %v1186 = vsub.s32 %v32, %v1185
    %v1187 = vrot.slane %v1010, %v1186
    %v1188 = vlaneseq
    %v1189 = vshrl.u32 %v1188, 7
    %v1190 = vsub.s32 %v1068, %v1189
    %v1191 = vrot.slane %v1013, %v1190
    %v1192 = vsel %vm1073, %v1191, %v1187
    %v1193 = vlaneseq
    %v1194 = vshrl.u32 %v1193, 7
    %v1195 = vsub.s32 %v1075, %v1194
    %v1196 = vrot.slane %v1016, %v1195
    %v1197 = vsel %vm1080, %v1196, %v1192
    %v1198 = vlaneseq
    %v1199 = vshrl.u32 %v1198, 7
    %v1200 = vsub.s32 %v1082, %v1199
    %v1201 = vrot.slane %v1019, %v1200
    %v1202 = vsel %vm1087, %v1201, %v1197
    %v1203 = vlaneseq
    %v1204 = vshrl.u32 %v1203, 7
    %v1205 = vsub.s32 %v32, %v1204
    %v1206 = vrot.slane %v1022, %v1205
    %v1207 = vlaneseq
    %v1208 = vshrl.u32 %v1207, 7
    %v1209 = vsub.s32 %v1068, %v1208
    %v1210 = vrot.slane %v1025, %v1209
    %v1211 = vsel %vm1073, %v1210, %v1206
    %v1212 = vlaneseq
    %v1213 = vshrl.u32 %v1212, 7
    %v1214 = vsub.s32 %v1075, %v1213
    %v1215 = vrot.slane %v1028, %v1214
    %v1216 = vsel %vm1080, %v1215, %v1211
    %v1217 = vlaneseq
    %v1218 = vshrl.u32 %v1217, 7
    %v1219 = vsub.s32 %v1082, %v1218
    %v1220 = vrot.slane %v1031, %v1219
    %v1221 = vsel %vm1087, %v1220, %v1216
    %vm1222 = vcmask 1041409
    %v1223 = vsel %vm1222, %v1107, %v1088
    %vm1224 = vcmask 1042434
    %v1225 = vsel %vm1224, %v1126, %v1223
    %vm1226 = vcmask 1043459
    %v1227 = vsel %vm1226, %v1145, %v1225
    %vm1228 = vcmask 1044484
    %v1229 = vsel %vm1228, %v1164, %v1227
    %vm1230 = vcmask 1045509
    %v1231 = vsel %vm1230, %v1183, %v1229
    %vm1232 = vcmask 1046534
    %v1233 = vsel %vm1232, %v1202, %v1231
    %vm1234 = vcmask 1047559
    %v1235 = vsel %vm1234, %v1221, %v1233
    %v1237 = vsel %vm82, %v1235, 0.0
    %1238 = vadd.xlane.f32.xlu0 %v1237
    %v1239 = vpop.xlane.xlu0 %1238
    %v1240 = vrsqrt.pop %v1239
    %v1241 = vmul.f32 %v1239, %v1240
    %vm1242 = vcmp.eq.f32.partialorder %v1239, inf
    %v1243 = vsel %vm1242, %v1239, %v1241
    %vm1244 = vcmp.eq.f32.partialorder %v1239, 0.0
    %v1245 = vand.u32 %v1239, 2147483648
    %v1246 = vsel %vm1244, %v1245, %v1243
    %vm1247 = vcmask 7168
    %v1248 = vsel %vm1247, %v1246, 0.0
    %1249 = vadd.xlane.f32.xlu0 %v1248
    %v1250 = vpop.xlane.xlu0 %1249
    %v1251 = vrot.slane %v1250, 4
    %v1252 = vadd.f32 %v1250, %v1251
    %v1253 = vrot.slane %v1252, 2
    %v1254 = vadd.f32 %v1252, %v1253
    %v1255 = vrot.slane %v1254, 1
    %v1256 = vadd.f32 %v1254, %v1255
    %s1257 = vtos %v1256
    %vm1258 = vcmp.eq.s32.totalorder %v860, 0
    %vm1259 = vcmp.eq.s32.totalorder %v32, 0
    %vm1260 = vmand %vm1258, %vm1259
    %vm1261 = vcmp.eq.s32.totalorder %v32, 1
    %vm1262 = vmand %vm1258, %vm1261
    %v1263 = vstv %s1257
    %v1264 = vsel %vm1262, %v1263, 0.0
    %v1265 = vstv %s49
    %v1266 = vsel %vm1260, %v1265, %v1264
    %1267 = vst [vmem:[#allocation5] sm:$0xff] %v1266
    // Predicated region
    $region18: #{tpu_custom_call.1} parent=1 // pred_check
      _
    $region19: #{tpu_custom_call.1} parent=1 // pred_check_branch
      %1269 = sbr.rel (0) target = $region21
    $region20: #{tpu_custom_call.1} parent=1 // pred_region
      %s1271 = ssub.s32 128, 128
      %1272 = vsyncadd [#allocation4], %s1271
      %s1274 = sshll.u32 [#allocation5], 4
      %s1275 = int_to_ptr.vmem [resolvable:$true] %s1274
      %1277 = dma.vmem_to_hbm [thread:$0]  %s1275, 128, %s3, [#allocation4]
    $region21: #{tpu_custom_call.1} parent=1 // pred_fallthru
      _
    // Predicated region
    $region22: #{tpu_custom_call.1} parent=1 // pred_check
      _
    $region23: #{tpu_custom_call.1} parent=1 // pred_check_branch
      %1279 = sbr.rel (0) target = $region25
    $region24: #{tpu_custom_call.1} parent=1 // pred_region
      %1280 = dma.done [#allocation4], 128
    $region25: #{tpu_custom_call.1} parent=1 // pred_fallthru
      _
    %1281 = vsyncpa [#allocation3], 1
    %1282 = vsyncpa [#allocation4], 1

</llo_original>
